<compile_context>
chip_gen: v7x
topology: tpu7x:2x2x1
jax: 0.10.0
libtpu: 0.0.40
codegen_flags: <defaults>
</compile_context>

<pallas_src>
import jax
import jax.numpy as jnp
from jax.experimental import pallas as pl
from jax.experimental.pallas import tpu as pltpu

_LANES = 512  # slab width; multiple of 128 → long unmasked vst runs


def _sigmoid(v):
    # Single-EUP sigmoid: one tanh push instead of exp + divide.
    return 0.5 * (jnp.tanh(0.5 * v) + 1.0)


def _silu(v):
    # SiLU(x) = x * sigmoid(x)
    return v * _sigmoid(v)


def _csilu_split_kernel(re_ref, im_ref, ore_ref, oim_ref):
    """use_phase=False: SiLU applied independently to real and imag planes."""
    ore_ref[...] = _silu(re_ref[...])
    oim_ref[...] = _silu(im_ref[...])


def _csilu_phase_kernel(re_ref, im_ref, ore_ref, oim_ref):
    """use_phase=True: SiLU(|x|) * exp(1j*angle(x)) == sigmoid(|x|) * x."""
    re = re_ref[...]
    im = im_ref[...]
    mag = jnp.sqrt(re * re + im * im)
    scale = _sigmoid(mag)  # == SiLU(mag) / mag, well-defined at mag == 0
    ore_ref[...] = scale * re
    oim_ref[...] = scale * im


def _default_tile_rows():
    """Bigger blocks on v6e/v7x (32 MiB scoped VMEM default); conservative
    512-row blocks elsewhere (v5e has a 16 MiB scoped default)."""
    try:
        kind = jax.devices()[0].device_kind.lower()
    except Exception:
        return 512
    if "v6" in kind or "v7" in kind or "7x" in kind:
        return 1024
    return 512


def csilu(x, use_phase=False, *, lanes=_LANES, tile_rows=None):
    """Complex SiLU. `x` is a complex64 array of arbitrary shape."""
    orig_shape = x.shape

    # Planar f32 views. This (plus the optional tail pad below) is a single
    # multi-output XLA fusion: one read of x, one write of (re, im).
    re = jnp.real(x).astype(jnp.float32).reshape(-1)
    im = jnp.imag(x).astype(jnp.float32).reshape(-1)
    n = re.size

    rows = pl.cdiv(n, lanes)
    padded = rows * lanes
    if padded != n:  # skip the pad entirely in the common aligned case
        re = jnp.pad(re, (0, padded - n))
        im = jnp.pad(im, (0, padded - n))
    re = re.reshape(rows, lanes)
    im = im.reshape(rows, lanes)

    if tile_rows is None:
        tile_rows = _default_tile_rows()
    if rows <= tile_rows:
        tr = rows          # single block spanning the full row extent
    else:
        tr = tile_rows     # multiple of 8; partial last block is clipped
    grid = (pl.cdiv(rows, tr),)

    spec = pl.BlockSpec((tr, lanes), lambda i: (i, 0))
    kernel = _csilu_phase_kernel if use_phase else _csilu_split_kernel

    plane = rows * lanes
    cost = pl.CostEstimate(
        flops=8 * plane,            # a few VPU ops per element, both planes
        transcendentals=2 * plane,  # tanh (+ sqrt for the phase path)
        bytes_accessed=16 * plane,  # 2 f32 in + 2 f32 out
    )

    out_re, out_im = pl.pallas_call(
        kernel,
        out_shape=(
            jax.ShapeDtypeStruct((rows, lanes), jnp.float32),
            jax.ShapeDtypeStruct((rows, lanes), jnp.float32),
        ),
        grid_spec=pltpu.PrefetchScalarGridSpec(
            num_scalar_prefetch=0,
            grid=grid,
            in_specs=[spec, spec],
            out_specs=[spec, spec],
        ),
        compiler_params=pltpu.CompilerParams(
            dimension_semantics=("parallel",),
        ),
        cost_estimate=cost,
    )(re, im)

    # Slice off the tail pad (if any) and recombine — one fused pass.
    out_re = out_re.reshape(-1)[:n].reshape(orig_shape)
    out_im = out_im.reshape(-1)[:n].reshape(orig_shape)
    return jax.lax.complex(out_re, out_im)


def _csilu_ref(x, use_phase=False):
    """Pure-JAX reference matching the PyTorch module."""
    if use_phase:
        return (jax.nn.silu(jnp.abs(x)) * jnp.exp(1j * jnp.angle(x))).astype(
            jnp.complex64
        )
    return (jax.nn.silu(jnp.real(x)) + 1j * jax.nn.silu(jnp.imag(x))).astype(
        jnp.complex64
    )


if __name__ == "__main__":
    key = jax.random.PRNGKey(0)
    k_re, k_im = jax.random.split(key)
    shape = (2, 4, 16, 16)  # NCHW, small synthetic input
    x = jax.lax.complex(
        jax.random.normal(k_re, shape, dtype=jnp.float32),
        jax.random.normal(k_im, shape, dtype=jnp.float32),
    )

    # Default path (use_phase=False), matching the PyTorch module's default.
    out = jax.block_until_ready(csilu(x, use_phase=False))
    ref = _csilu_ref(x, use_phase=False)
    assert out.shape == shape and out.dtype == jnp.complex64
    assert jnp.allclose(out, ref, atol=1e-5, rtol=1e-5)

    # Also check the use_phase=True branch.
    out_p = jax.block_until_ready(csilu(x, use_phase=True))
    ref_p = _csilu_ref(x, use_phase=True)
    assert jnp.allclose(out_p, ref_p, atol=1e-5, rtol=1e-5)

    print("KERNEL_OK")
</pallas_src>

<mosaic_0001>
module attributes {stable_mosaic.version = 11 : i64} {
  func.func @_csilu_split_kernel(%arg0: i32, %arg1: memref<4x512xf32, #tpu.memory_space<vmem>>, %arg2: memref<4x512xf32, #tpu.memory_space<vmem>>, %arg3: memref<4x512xf32, #tpu.memory_space<vmem>>, %arg4: memref<4x512xf32, #tpu.memory_space<vmem>>) attributes {dimension_semantics = [#tpu.dimension_semantics<parallel>], iteration_bounds = array<i64: 1>, scalar_prefetch = 0 : i64, scratch_operands = 0 : i64, tpu.core_type = #tpu.core_type<tc>, window_params = [{transform_indices = @transform_0, window_bounds = array<i64: 4, 512>}, {transform_indices = @transform_1, window_bounds = array<i64: 4, 512>}, {transform_indices = @transform_2, window_bounds = array<i64: 4, 512>}, {transform_indices = @transform_3, window_bounds = array<i64: 4, 512>}]} {
    %c0 = arith.constant 0 : index
    %c0_0 = arith.constant 0 : index
    %0 = vector.load %arg1[%c0, %c0_0] : memref<4x512xf32, #tpu.memory_space<vmem>>, vector<4x512xf32>
    %cst = arith.constant 5.000000e-01 : f32
    %1 = vector.broadcast %cst : f32 to vector<4x512xf32>
    %2 = arith.mulf %1, %0 : vector<4x512xf32>
    %3 = math.tanh %2 : vector<4x512xf32>
    %cst_1 = arith.constant 1.000000e+00 : f32
    %4 = vector.broadcast %cst_1 : f32 to vector<4x512xf32>
    %5 = arith.addf %3, %4 : vector<4x512xf32>
    %cst_2 = arith.constant 5.000000e-01 : f32
    %6 = vector.broadcast %cst_2 : f32 to vector<4x512xf32>
    %7 = arith.mulf %6, %5 : vector<4x512xf32>
    %8 = arith.mulf %0, %7 : vector<4x512xf32>
    %c0_3 = arith.constant 0 : index
    %c0_4 = arith.constant 0 : index
    %9 = vector.load %arg3[%c0_3, %c0_4] : memref<4x512xf32, #tpu.memory_space<vmem>>, vector<4x512xf32>
    tpu.vector_store %arg3[%c0_3, %c0_4], %8 {strides = array<i32>} : memref<4x512xf32, #tpu.memory_space<vmem>>, vector<4x512xf32>,
    %c0_5 = arith.constant 0 : index
    %c0_6 = arith.constant 0 : index
    %10 = vector.load %arg2[%c0_5, %c0_6] : memref<4x512xf32, #tpu.memory_space<vmem>>, vector<4x512xf32>
    %cst_7 = arith.constant 5.000000e-01 : f32
    %11 = vector.broadcast %cst_7 : f32 to vector<4x512xf32>
    %12 = arith.mulf %11, %10 : vector<4x512xf32>
    %13 = math.tanh %12 : vector<4x512xf32>
    %cst_8 = arith.constant 1.000000e+00 : f32
    %14 = vector.broadcast %cst_8 : f32 to vector<4x512xf32>
    %15 = arith.addf %13, %14 : vector<4x512xf32>
    %cst_9 = arith.constant 5.000000e-01 : f32
    %16 = vector.broadcast %cst_9 : f32 to vector<4x512xf32>
    %17 = arith.mulf %16, %15 : vector<4x512xf32>
    %18 = arith.mulf %10, %17 : vector<4x512xf32>
    %c0_10 = arith.constant 0 : index
    %c0_11 = arith.constant 0 : index
    %19 = vector.load %arg4[%c0_10, %c0_11] : memref<4x512xf32, #tpu.memory_space<vmem>>, vector<4x512xf32>
    tpu.vector_store %arg4[%c0_10, %c0_11], %18 {strides = array<i32>} : memref<4x512xf32, #tpu.memory_space<vmem>>, vector<4x512xf32>,
    return
  }
  func.func @transform_0(%arg0: i32) -> (i32, i32) {
    %c0_i32 = arith.constant 0 : i32
    %c0_i32_0 = arith.constant 0 : i32
    return %arg0, %c0_i32 : i32, i32
  }
  func.func @transform_1(%arg0: i32) -> (i32, i32) {
    %c0_i32 = arith.constant 0 : i32
    %c0_i32_0 = arith.constant 0 : i32
    return %arg0, %c0_i32 : i32, i32
  }
  func.func @transform_2(%arg0: i32) -> (i32, i32) {
    %c0_i32 = arith.constant 0 : i32
    %c0_i32_0 = arith.constant 0 : i32
    return %arg0, %c0_i32 : i32, i32
  }
  func.func @transform_3(%arg0: i32) -> (i32, i32) {
    %c0_i32 = arith.constant 0 : i32
    %c0_i32_0 = arith.constant 0 : i32
    return %arg0, %c0_i32 : i32, i32
  }
}

</mosaic_0001>

<llo_original>
// kernel: tpu_custom_call.1
$region0: #{tpu_custom_call.1}
  #allocation0 [shape = 'u32[]', space=smem, size = 0x4, offset = 0x4, fixed_abs, tag = 'smem constant byte address 0x4 - core index']
  #allocation1 [shape = 'u32[144,128]{1,0:T(1,128)}', space=vmem, size = 0x12000, scoped, tag = 'internal scratch']
  %s0 = inlined_call_operand.hbm [shape: f32[4,512], index: 0, kind: input, shape index: {}]
  %s1 = inlined_call_operand.hbm [shape: f32[4,512], index: 1, kind: input, shape index: {}]
  %s2 = inlined_call_operand.hbm [shape: f32[4,512], index: 2, kind: output, shape index: {0}]
  %s3 = inlined_call_operand.hbm [shape: f32[4,512], index: 3, kind: output, shape index: {1}]
  %4 = xla_tuple %s2, %s3
  %s5 = sld [smem:[#allocation0]]
  $region34: #{tpu_custom_call.1} parent=0
    _
  %s7 = ssub.s32 1, %s5
  %s8 = scalar_select 0, %s7, %s5
  $region1: #{tpu_custom_call.1} parent=0
    #allocation2 [shape = 'u8[8192]{0}', space=vmem, size = 0x2000, scoped, tag = 'input window, operand 0, single buffered']
    #allocation3 [shape = 's32[1]{0}', space=sflag, size = 0x4, scoped, tag = 'scoped memory for tpu_custom_call.1']
    #allocation4 [shape = 's32[1]{0}', space=sflag, size = 0x4, scoped, tag = 'scoped memory for tpu_custom_call.1']
    #allocation5 [shape = 'u8[8192]{0}', space=vmem, size = 0x2000, scoped, tag = 'input window, operand 1, single buffered']
    #allocation6 [shape = 's32[1]{0}', space=sflag, size = 0x4, scoped, tag = 'scoped memory for tpu_custom_call.1']
    #allocation7 [shape = 'u8[8192]{0}', space=vmem, size = 0x2000, scoped, tag = 'output window, operand 0, single buffered']
    #allocation8 [shape = 'u8[8192]{0}', space=vmem, size = 0x2000, scoped, tag = 'output window, operand 1, single buffered']
    #allocation9 [shape = 's32[1]{0}', space=sflag, size = 0x4, scoped, tag = 'scoped memory for tpu_custom_call.1']
    %9 = vsyncpa [#allocation3], 0
    %10 = vsyncpa [#allocation6], 0
    %11 = vsyncpa [#allocation4], 0
    %12 = vsyncpa [#allocation9], 0
    // Predicated region
    $region2: #{tpu_custom_call.1} parent=1 // pred_check
      _
    $region3: #{tpu_custom_call.1} parent=1 // pred_check_branch
      %14 = sbr.rel (0) target = $region5
    $region4: #{tpu_custom_call.1} parent=1 // pred_region
      %s16 = ssub.s32 256, 256
      %17 = vsyncadd [#allocation3], %s16
      %s19 = sshll.u32 [#allocation2], 4
      %s20 = int_to_ptr.vmem [resolvable:$true] %s19
      %22 = dma.hbm_to_vmem [thread:$0]  %s0, 256, %s20, [#allocation3]
    $region5: #{tpu_custom_call.1} parent=1 // pred_fallthru
      _
    // Predicated region
    $region6: #{tpu_custom_call.1} parent=1 // pred_check
      _
    $region7: #{tpu_custom_call.1} parent=1 // pred_check_branch
      %24 = sbr.rel (0) target = $region9
    $region8: #{tpu_custom_call.1} parent=1 // pred_region
      %s26 = ssub.s32 256, 256
      %27 = vsyncadd [#allocation6], %s26
      %s29 = sshll.u32 [#allocation5], 4
      %s30 = int_to_ptr.vmem [resolvable:$true] %s29
      %32 = dma.hbm_to_vmem [thread:$0]  %s1, 256, %s30, [#allocation6]
    $region9: #{tpu_custom_call.1} parent=1 // pred_fallthru
      _
    // Predicated region
    $region10: #{tpu_custom_call.1} parent=1 // pred_check
      _
    $region11: #{tpu_custom_call.1} parent=1 // pred_check_branch
      %34 = sbr.rel (0) target = $region13
    $region12: #{tpu_custom_call.1} parent=1 // pred_region
      %35 = dma.done [#allocation3], 256
    $region13: #{tpu_custom_call.1} parent=1 // pred_fallthru
      _
    // Predicated region
    $region14: #{tpu_custom_call.1} parent=1 // pred_check
      _
    $region15: #{tpu_custom_call.1} parent=1 // pred_check_branch
      %37 = sbr.rel (0) target = $region17
    $region16: #{tpu_custom_call.1} parent=1 // pred_region
      %38 = dma.done [#allocation6], 256
    $region17: #{tpu_custom_call.1} parent=1 // pred_fallthru
      _
    %v39 = vld [vmem:[#allocation2] sm:$0xff]
    %v40 = vld [vmem:[#allocation2 + $0x8] sm:$0xff]
    %v41 = vmul.f32 %v39, 0.5
    %v42 = vmul.f32 %v40, 0.5
    %v43 = vtanh.pop %v41
    %v44 = vtanh.pop %v42
    %v45 = vadd.f32 %v43, 1.0
    %v46 = vadd.f32 %v44, 1.0
    %v47 = vmul.f32 %v45, 0.5
    %v48 = vmul.f32 %v46, 0.5
    %v49 = vmul.f32 %v39, %v47
    %v50 = vmul.f32 %v40, %v48
    %51 = vst [vmem:[#allocation7] sm:$0xff] %v49
    %52 = vst [vmem:[#allocation7 + $0x8] sm:$0xff] %v50
    %v53 = vld [vmem:[#allocation5] sm:$0xff]
    %v54 = vld [vmem:[#allocation5 + $0x8] sm:$0xff]
    %v55 = vmul.f32 %v53, 0.5
    %v56 = vmul.f32 %v54, 0.5
    %v57 = vtanh.pop %v55
    %v58 = vtanh.pop %v56
    %v59 = vadd.f32 %v57, 1.0
    %v60 = vadd.f32 %v58, 1.0
    %v61 = vmul.f32 %v59, 0.5
    %v62 = vmul.f32 %v60, 0.5
    %v63 = vmul.f32 %v53, %v61
    %v64 = vmul.f32 %v54, %v62
    %65 = vst [vmem:[#allocation8] sm:$0xff] %v63
    %66 = vst [vmem:[#allocation8 + $0x8] sm:$0xff] %v64
    // Predicated region
    $region18: #{tpu_custom_call.1} parent=1 // pred_check
      _
    $region19: #{tpu_custom_call.1} parent=1 // pred_check_branch
      %68 = sbr.rel (0) target = $region21
    $region20: #{tpu_custom_call.1} parent=1 // pred_region
      %s70 = ssub.s32 256, 256
      %71 = vsyncadd [#allocation4], %s70
      %s73 = sshll.u32 [#allocation7], 4
      %s74 = int_to_ptr.vmem [resolvable:$true] %s73
      %76 = dma.vmem_to_hbm [thread:$0]  %s74, 256, %s2, [#allocation4]
    $region21: #{tpu_custom_call.1} parent=1 // pred_fallthru
      _
    // Predicated region
    $region22: #{tpu_custom_call.1} parent=1 // pred_check
      _
    $region23: #{tpu_custom_call.1} parent=1 // pred_check_branch
      %78 = sbr.rel (0) target = $region25
    $region24: #{tpu_custom_call.1} parent=1 // pred_region
      %s80 = ssub.s32 256, 256
      %81 = vsyncadd [#allocation9], %s80
      %s83 = sshll.u32 [#allocation8], 4
      %s84 = int_to_ptr.vmem [resolvable:$true] %s83
      %86 = dma.vmem_to_hbm [thread:$0]  %s84, 256, %s3, [#allocation9]
    $region25: #{tpu_custom_call.1} parent=1 // pred_fallthru
      _
    // Predicated region
    $region26: #{tpu_custom_call.1} parent=1 // pred_check
      _
    $region27: #{tpu_custom_call.1} parent=1 // pred_check_branch
      %88 = sbr.rel (0) target = $region29
    $region28: #{tpu_custom_call.1} parent=1 // pred_region
      %89 = dma.done [#allocation4], 256
    $region29: #{tpu_custom_call.1} parent=1 // pred_fallthru
      _
    // Predicated region
    $region30: #{tpu_custom_call.1} parent=1 // pred_check
      _
    $region31: #{tpu_custom_call.1} parent=1 // pred_check_branch
      %91 = sbr.rel (0) target = $region33
    $region32: #{tpu_custom_call.1} parent=1 // pred_region
      %92 = dma.done [#allocation9], 256
    $region33: #{tpu_custom_call.1} parent=1 // pred_fallthru
      _
    %93 = vsyncpa [#allocation3], 1
    %94 = vsyncpa [#allocation6], 1
    %95 = vsyncpa [#allocation4], 1
    %96 = vsyncpa [#allocation9], 1

</llo_original>
